<compile_context>
chip_gen: v7x
topology: tpu7x:2x2x1
jax: 0.10.0
libtpu: 0.0.40
codegen_flags: <defaults>
</compile_context>

<pallas_src>
import functools

import jax
import jax.numpy as jnp
from jax.experimental import pallas as pl
from jax.experimental.pallas import tpu as pltpu


def _se_kernel(x_ref, w1_ref, b1_ref, w2_ref, b2_ref, o_ref, *, use_mxu):
    # x block: (NB, C, HW); weights/biases are full (untiled) blocks.
    inv_hw = 1.0 / x_ref.shape[-1]                        # folded Python constant

    if use_mxu:
        # Large-C path: pooled (NB, C) activations; both tiny contractions go
        # through the MXU (completely idle in this DMA-bound kernel).
        s = jnp.sum(x_ref[...].astype(jnp.float32), axis=-1) * inv_hw          # (NB, C)
        h = jnp.dot(s, w1_ref[...], preferred_element_type=jnp.float32)        # (NB, mid)
        h = jnp.maximum(h + b1_ref[...], 0.0)
        z = jnp.dot(h, w2_ref[...], preferred_element_type=jnp.float32)        # (NB, C)
        g = jax.nn.sigmoid(z + b2_ref[...])[:, :, None]                        # (NB, C, 1)
    else:
        # Small-C path: VPU broadcast-multiplies + XLU keepdims reductions.
        s = (jnp.sum(x_ref[...].astype(jnp.float32), axis=-1, keepdims=True)
             * inv_hw)                                                          # (NB, C, 1)
        h = jnp.sum(s * w1_ref[...][None, :, :], axis=1, keepdims=True) + b1_ref[...]   # (NB, 1, mid)
        h = jnp.maximum(h, 0.0)                                                 # ReLU
        z = jnp.sum(h * w2_ref[...][None, :, :], axis=-1, keepdims=True) + b2_ref[...]  # (NB, C, 1)
        g = jax.nn.sigmoid(z)                                                   # (NB, C, 1)  (EUP)

    # Re-weight: re-read the still-VMEM-resident input block (3 vld slots/cycle,
    # essentially free) instead of keeping the pre-pool value live across the
    # full-lane reduction, which would force multi-MiB vreg spills.
    o_ref[...] = (x_ref[...] * g).astype(o_ref.dtype)


def _tpu_vmem_bytes_and_cores():
    """Best-effort query of per-TensorCore VMEM capacity and TC-per-chip count.
    Falls back to conservative values (64 MiB, 1 core) if the query fails."""
    vmem = 64 << 20
    cores = 1
    try:
        info = pltpu.get_tpu_info()
        vmem = int(getattr(info, "vmem_capacity_bytes", vmem)) or vmem
    except Exception:
        pass
    try:
        kind = str(jax.devices()[0].device_kind).lower()
        if "v7" in kind:
            cores = 2
    except Exception:
        pass
    return vmem, cores


def _pick_batch_block(n, c, hw, itemsize, block_budget, multi_core):
    """Largest divisor NB of n whose double-buffered in+out blocks (4x block)
    fit in `block_budget`.  On dual-TensorCore chips (v7x) keep >= 2 grid
    steps, preferring an even step count so the 'parallel' batch axis splits
    evenly across both cores; on single-TC chips (v5e/v6e) just grow NB."""
    per_sample = 4 * c * hw * itemsize          # 2x(in) + 2x(out) buffers / sample
    candidates = []
    for nb in range(1, n + 1):
        if n % nb:
            continue
        if nb > 1 and nb * per_sample > block_budget:
            continue
        if multi_core and n >= 2 and (n // nb) < 2:
            continue
        candidates.append(nb)
    if not candidates:
        return 1
    if multi_core:
        even = [nb for nb in candidates if (n // nb) % 2 == 0]
        if even:
            candidates = even
    return max(candidates)


def se_block(x_nchw, w1, b1, w2, b2, *, donate_input=False):
    """x_nchw: (N, C, H, W).
    w1: (mid, C) / b1: (mid,)  -- Conv2d(C, mid, 1) weights (1x1 dims squeezed)
    w2: (C, mid) / b2: (C,)    -- Conv2d(mid, C, 1) weights (1x1 dims squeezed)
    donate_input: set True only if the caller donates x (x dead afterwards);
    otherwise aliasing would just trigger a defensive copy in XLA.
    """
    N, C, H, W = x_nchw.shape
    mid = w1.shape[0]
    HW = H * W

    # Free reshape: NCHW -> (N, C, HW).  No HBM transpose passes.
    # TODO(synk): for SE shapes where HW is not a multiple of 128 (7x7, 14x14,
    # 28x28) and the surrounding model is already channels-last, use an
    # (N, HW, C) layout so the store path stays lane-dense.
    x = x_nchw.reshape(N, C, HW)

    vmem_bytes, cores = _tpu_vmem_bytes_and_cores()
    # Generation-aware block budget: ~3/8 of VMEM for the 2x(in)+2x(out) block
    # buffers -> ~48 MiB on v5e/v6e (128 MiB VMEM), ~24 MiB on v7x (64 MiB).
    block_budget = min((vmem_bytes * 3) // 8, 48 << 20)
    NB = _pick_batch_block(N, C, HW, x.dtype.itemsize, block_budget, cores >= 2)
    grid = (N // NB,)

    block_bytes = NB * C * HW * x.dtype.itemsize
    weight_bytes = (2 * C * mid + C + mid) * 4
    vmem_needed = 4 * block_bytes + weight_bytes + (2 << 20)
    # Scoped-VMEM ceiling derived from physical capacity (<= 5/8 of it):
    # ~80 MiB on v5e/v6e, ~40 MiB on v7x.  Only override the default if needed.
    vmem_cap = (vmem_bytes * 5) // 8
    vmem_limit = int(min(vmem_needed, vmem_cap)) if vmem_needed > (16 << 20) else None
    # TODO(synk): if a single (1, C, HW) sample block still exceeds the budget
    # (huge feature maps on v7x), switch to a two-pass scheme: HW-tiled pool
    # into an (N, C) scratch on an 'arbitrary' axis, then an HW-tiled scale
    # pass -- 1.5x HBM traffic but small, lane-dense tiles.

    # Excitation path selection: tiny C stays on VPU/XLU; large C uses the MXU.
    use_mxu = (C >= 128) and (mid >= 16)
    if use_mxu:
        w1k = jnp.transpose(w1)              # (C, mid)
        w2k = jnp.transpose(w2)              # (mid, C)
        b1k = b1.reshape(1, mid)
        b2k = b2.reshape(1, C)
    else:
        w1k = jnp.transpose(w1)              # (C, mid)
        w2k = w2                             # (C, mid), already C-major
        b1k = b1.reshape(1, 1, mid)
        b2k = b2.reshape(1, C, 1)

    def _const_spec(arr):
        zeros = (0,) * arr.ndim
        return pl.BlockSpec(arr.shape, lambda n, _z=zeros: _z)

    out = pl.pallas_call(
        functools.partial(_se_kernel, use_mxu=use_mxu),
        out_shape=jax.ShapeDtypeStruct((N, C, HW), x.dtype),
        grid_spec=pltpu.PrefetchScalarGridSpec(
            num_scalar_prefetch=0,
            grid=grid,
            in_specs=[
                pl.BlockSpec((NB, C, HW), lambda n: (n, 0, 0)),   # x
                _const_spec(w1k),
                _const_spec(b1k),
                _const_spec(w2k),
                _const_spec(b2k),
            ],
            out_specs=pl.BlockSpec((NB, C, HW), lambda n: (n, 0, 0)),
        ),
        input_output_aliases=({0: 0} if donate_input else {}),
        compiler_params=pltpu.CompilerParams(
            dimension_semantics=("parallel",),
            vmem_limit_bytes=vmem_limit,
        ),
    )(x, w1k, b1k, w2k, b2k)

    # Free reshape back to NCHW.
    return out.reshape(N, C, H, W)


def _reference(x, w1, b1, w2, b2):
    # Pure-JAX reference matching PyTorch SEBlock semantics.
    s = jnp.mean(x, axis=(2, 3))                                             # (N, C)
    h = jnp.maximum(jnp.einsum("nc,mc->nm", s, w1, precision="highest") + b1, 0.0)
    g = jax.nn.sigmoid(jnp.einsum("nm,cm->nc", h, w2, precision="highest") + b2)
    return x * g[:, :, None, None]


if __name__ == "__main__":
    # Small shapes consistent with the module: ch=32, r=16 -> mid=2.
    N, C, H, W = 2, 32, 16, 16
    r = 16
    mid = C // r

    key = jax.random.PRNGKey(0)
    kx, k1, k2, k3, k4 = jax.random.split(key, 5)

    x = jax.random.normal(kx, (N, C, H, W), dtype=jnp.float32)
    # Deterministic synthetic parameters (shapes follow Conv2d(ch, ch//r, 1)
    # and Conv2d(ch//r, ch, 1), with the trailing 1x1 kernel dims squeezed).
    w1 = jax.random.normal(k1, (mid, C), dtype=jnp.float32) * (1.0 / jnp.sqrt(C))
    b1 = jax.random.normal(k2, (mid,), dtype=jnp.float32) * 0.1
    w2 = jax.random.normal(k3, (C, mid), dtype=jnp.float32) * (1.0 / jnp.sqrt(mid))
    b2 = jax.random.normal(k4, (C,), dtype=jnp.float32) * 0.1

    ref = _reference(x, w1, b1, w2, b2)

    out = jax.block_until_ready(se_block(x, w1, b1, w2, b2))

    assert out.shape == (N, C, H, W)
    assert jnp.allclose(out, ref, atol=1e-5, rtol=1e-5)

    print("KERNEL_OK")
</pallas_src>

<mosaic_0001>
module attributes {stable_mosaic.version = 11 : i64} {
  func.func @_se_kernel(%arg0: i32, %arg1: memref<2x32x256xf32, #tpu.memory_space<vmem>>, %arg2: memref<32x2xf32, #tpu.memory_space<vmem>>, %arg3: memref<1x1x2xf32, #tpu.memory_space<vmem>>, %arg4: memref<32x2xf32, #tpu.memory_space<vmem>>, %arg5: memref<1x32x1xf32, #tpu.memory_space<vmem>>, %arg6: memref<2x32x256xf32, #tpu.memory_space<vmem>>) attributes {dimension_semantics = [#tpu.dimension_semantics<parallel>], iteration_bounds = array<i64: 1>, scalar_prefetch = 0 : i64, scratch_operands = 0 : i64, tpu.core_type = #tpu.core_type<tc>, window_params = [{transform_indices = @transform_0, window_bounds = array<i64: 2, 32, 256>}, {pipeline_mode = #tpu.pipeline_mode<synchronous>, transform_indices = @transform_1, window_bounds = array<i64: 32, 2>}, {pipeline_mode = #tpu.pipeline_mode<synchronous>, transform_indices = @transform_2, window_bounds = array<i64: 1, 1, 2>}, {pipeline_mode = #tpu.pipeline_mode<synchronous>, transform_indices = @transform_3, window_bounds = array<i64: 32, 2>}, {pipeline_mode = #tpu.pipeline_mode<synchronous>, transform_indices = @transform_4, window_bounds = array<i64: 1, 32, 1>}, {transform_indices = @transform_5, window_bounds = array<i64: 2, 32, 256>}]} {
    %c0 = arith.constant 0 : index
    %c0_0 = arith.constant 0 : index
    %c0_1 = arith.constant 0 : index
    %0 = vector.load %arg1[%c0, %c0_0, %c0_1] : memref<2x32x256xf32, #tpu.memory_space<vmem>>, vector<2x32x256xf32>
    %cst = arith.constant dense<0.000000e+00> : vector<2x32xf32>
    %1 = vector.multi_reduction <add>, %0, %cst [2] : vector<2x32x256xf32> to vector<2x32xf32>
    %2 = vector.shape_cast %1 : vector<2x32xf32> to vector<2x32x1xf32>
    %cst_2 = arith.constant 3.906250e-03 : f32
    %3 = vector.broadcast %cst_2 : f32 to vector<2x32x1xf32>
    %4 = arith.mulf %2, %3 : vector<2x32x1xf32>
    %c0_3 = arith.constant 0 : index
    %c0_4 = arith.constant 0 : index
    %5 = vector.load %arg2[%c0_3, %c0_4] : memref<32x2xf32, #tpu.memory_space<vmem>>, vector<32x2xf32>
    %6 = vector.shape_cast %5 : vector<32x2xf32> to vector<1x32x2xf32>
    %7 = vector.broadcast %4 : vector<2x32x1xf32> to vector<2x32x2xf32>
    %8 = vector.broadcast %6 : vector<1x32x2xf32> to vector<2x32x2xf32>
    %9 = arith.mulf %7, %8 : vector<2x32x2xf32>
    %cst_5 = arith.constant dense<0.000000e+00> : vector<2x2xf32>
    %10 = vector.multi_reduction <add>, %9, %cst_5 [1] : vector<2x32x2xf32> to vector<2x2xf32>
    %11 = vector.shape_cast %10 : vector<2x2xf32> to vector<2x1x2xf32>
    %c0_6 = arith.constant 0 : index
    %c0_7 = arith.constant 0 : index
    %c0_8 = arith.constant 0 : index
    %12 = vector.load %arg3[%c0_6, %c0_7, %c0_8] : memref<1x1x2xf32, #tpu.memory_space<vmem>>, vector<1x1x2xf32>
    %13 = vector.broadcast %12 : vector<1x1x2xf32> to vector<2x1x2xf32>
    %14 = arith.addf %11, %13 : vector<2x1x2xf32>
    %cst_9 = arith.constant 0.000000e+00 : f32
    %15 = vector.broadcast %cst_9 : f32 to vector<2x1x2xf32>
    %16 = arith.maximumf %14, %15 : vector<2x1x2xf32>
    %c0_10 = arith.constant 0 : index
    %c0_11 = arith.constant 0 : index
    %17 = vector.load %arg4[%c0_10, %c0_11] : memref<32x2xf32, #tpu.memory_space<vmem>>, vector<32x2xf32>
    %18 = vector.shape_cast %17 : vector<32x2xf32> to vector<1x32x2xf32>
    %19 = vector.broadcast %16 : vector<2x1x2xf32> to vector<2x32x2xf32>
    %20 = vector.broadcast %18 : vector<1x32x2xf32> to vector<2x32x2xf32>
    %21 = arith.mulf %19, %20 : vector<2x32x2xf32>
    %cst_12 = arith.constant dense<0.000000e+00> : vector<2x32xf32>
    %22 = vector.multi_reduction <add>, %21, %cst_12 [2] : vector<2x32x2xf32> to vector<2x32xf32>
    %23 = vector.shape_cast %22 : vector<2x32xf32> to vector<2x32x1xf32>
    %c0_13 = arith.constant 0 : index
    %c0_14 = arith.constant 0 : index
    %c0_15 = arith.constant 0 : index
    %24 = vector.load %arg5[%c0_13, %c0_14, %c0_15] : memref<1x32x1xf32, #tpu.memory_space<vmem>>, vector<1x32x1xf32>
    %25 = vector.broadcast %24 : vector<1x32x1xf32> to vector<2x32x1xf32>
    %26 = arith.addf %23, %25 : vector<2x32x1xf32>
    %27 = arith.negf %26 : vector<2x32x1xf32>
    %28 = math.exp %27 : vector<2x32x1xf32>
    %cst_16 = arith.constant 1.000000e+00 : f32
    %29 = vector.broadcast %cst_16 : f32 to vector<2x32x1xf32>
    %30 = arith.addf %29, %28 : vector<2x32x1xf32>
    %31 = arith.divf %29, %30 : vector<2x32x1xf32>
    %c0_17 = arith.constant 0 : index
    %c0_18 = arith.constant 0 : index
    %c0_19 = arith.constant 0 : index
    %32 = vector.load %arg1[%c0_17, %c0_18, %c0_19] : memref<2x32x256xf32, #tpu.memory_space<vmem>>, vector<2x32x256xf32>
    %33 = vector.broadcast %31 : vector<2x32x1xf32> to vector<2x32x256xf32>
    %34 = arith.mulf %32, %33 : vector<2x32x256xf32>
    %c0_20 = arith.constant 0 : index
    %c0_21 = arith.constant 0 : index
    %c0_22 = arith.constant 0 : index
    %35 = vector.load %arg6[%c0_20, %c0_21, %c0_22] : memref<2x32x256xf32, #tpu.memory_space<vmem>>, vector<2x32x256xf32>
    tpu.vector_store %arg6[%c0_20, %c0_21, %c0_22], %34 {strides = array<i32>} : memref<2x32x256xf32, #tpu.memory_space<vmem>>, vector<2x32x256xf32>,
    return
  }
  func.func @transform_0(%arg0: i32) -> (i32, i32, i32) {
    %c0_i32 = arith.constant 0 : i32
    %c0_i32_0 = arith.constant 0 : i32
    %c0_i32_1 = arith.constant 0 : i32
    return %arg0, %c0_i32, %c0_i32_0 : i32, i32, i32
  }
  func.func @transform_1(%arg0: i32) -> (i32, i32) {
    %c0_i32 = arith.constant 0 : i32
    %c0_i32_0 = arith.constant 0 : i32
    %c0_i32_1 = arith.constant 0 : i32
    return %c0_i32, %c0_i32_0 : i32, i32
  }
  func.func @transform_2(%arg0: i32) -> (i32, i32, i32) {
    %c0_i32 = arith.constant 0 : i32
    %c0_i32_0 = arith.constant 0 : i32
    %c0_i32_1 = arith.constant 0 : i32
    %c0_i32_2 = arith.constant 0 : i32
    return %c0_i32, %c0_i32_0, %c0_i32_1 : i32, i32, i32
  }
  func.func @transform_3(%arg0: i32) -> (i32, i32) {
    %c0_i32 = arith.constant 0 : i32
    %c0_i32_0 = arith.constant 0 : i32
    %c0_i32_1 = arith.constant 0 : i32
    return %c0_i32, %c0_i32_0 : i32, i32
  }
  func.func @transform_4(%arg0: i32) -> (i32, i32, i32) {
    %c0_i32 = arith.constant 0 : i32
    %c0_i32_0 = arith.constant 0 : i32
    %c0_i32_1 = arith.constant 0 : i32
    %c0_i32_2 = arith.constant 0 : i32
    return %c0_i32, %c0_i32_0, %c0_i32_1 : i32, i32, i32
  }
  func.func @transform_5(%arg0: i32) -> (i32, i32, i32) {
    %c0_i32 = arith.constant 0 : i32
    %c0_i32_0 = arith.constant 0 : i32
    %c0_i32_1 = arith.constant 0 : i32
    return %arg0, %c0_i32, %c0_i32_0 : i32, i32, i32
  }
}

</mosaic_0001>

<llo_original>
// kernel: tpu_custom_call.1
$region0: #{tpu_custom_call.1}
  #allocation0 [shape = 'u32[]', space=smem, size = 0x4, offset = 0x4, fixed_abs, tag = 'smem constant byte address 0x4 - core index']
  #allocation1 [shape = 'u32[144,128]{1,0:T(1,128)}', space=vmem, size = 0x12000, scoped, tag = 'internal scratch']
  %s0 = inlined_call_operand.hbm [shape: f32[2,32,256], index: 0, kind: input, shape index: {}]
  %s1 = inlined_call_operand.vmem [shape: f32[32,2], index: 1, kind: input, shape index: {}]
  %s2 = inlined_call_operand.vmem [shape: f32[1,1,2], index: 2, kind: input, shape index: {}]
  %s3 = inlined_call_operand.vmem [shape: f32[32,2], index: 3, kind: input, shape index: {}]
  %s4 = inlined_call_operand.vmem [shape: f32[1,32,1], index: 4, kind: input, shape index: {}]
  %s5 = inlined_call_operand.hbm [shape: f32[2,32,256], index: 5, kind: output, shape index: {}]
  %s6 = sld [smem:[#allocation0]]
  $region34: #{tpu_custom_call.1} parent=0
    _
  %s8 = ssub.s32 1, %s6
  %s9 = scalar_select 0, %s8, %s6
  $region1: #{tpu_custom_call.1} parent=0
    #allocation2 [shape = 'u8[65536]{0}', space=vmem, size = 0x10000, scoped, tag = 'input window, operand 0, single buffered']
    #allocation3 [shape = 's32[1]{0}', space=sflag, size = 0x4, scoped, tag = 'scoped memory for tpu_custom_call.1']
    #allocation4 [shape = 's32[1]{0}', space=sflag, size = 0x4, scoped, tag = 'scoped memory for tpu_custom_call.1']
    #allocation5 [shape = 'u8[65536]{0}', space=vmem, size = 0x10000, scoped, tag = 'output window, operand 0, single buffered']
    %10 = vsyncpa [#allocation3], 0
    %11 = vsyncpa [#allocation4], 0
    // Predicated region
    $region2: #{tpu_custom_call.1} parent=1 // pred_check
      _
    $region3: #{tpu_custom_call.1} parent=1 // pred_check_branch
      %13 = sbr.rel (0) target = $region5
    $region4: #{tpu_custom_call.1} parent=1 // pred_region
      %s15 = ssub.s32 2048, 2048
      %16 = vsyncadd [#allocation3], %s15
      %s17 = sshll.u32 [#allocation2], 4
      %s18 = int_to_ptr.vmem [resolvable:$true] %s17
      %23 = dma.hbm_to_vmem [thread:$0]  %s0, 2048, %s18, [#allocation3], 256, 256, 16
    $region5: #{tpu_custom_call.1} parent=1 // pred_fallthru
      _
    // Predicated region
    $region6: #{tpu_custom_call.1} parent=1 // pred_check
      _
    $region7: #{tpu_custom_call.1} parent=1 // pred_check_branch
      %25 = sbr.rel (0) target = $region9
    $region8: #{tpu_custom_call.1} parent=1 // pred_region
      _
    $region9: #{tpu_custom_call.1} parent=1 // pred_fallthru
      _
    // Predicated region
    $region10: #{tpu_custom_call.1} parent=1 // pred_check
      _
    $region11: #{tpu_custom_call.1} parent=1 // pred_check_branch
      %27 = sbr.rel (0) target = $region13
    $region12: #{tpu_custom_call.1} parent=1 // pred_region
      _
    $region13: #{tpu_custom_call.1} parent=1 // pred_fallthru
      _
    // Predicated region
    $region14: #{tpu_custom_call.1} parent=1 // pred_check
      _
    $region15: #{tpu_custom_call.1} parent=1 // pred_check_branch
      %29 = sbr.rel (0) target = $region17
    $region16: #{tpu_custom_call.1} parent=1 // pred_region
      _
    $region17: #{tpu_custom_call.1} parent=1 // pred_fallthru
      _
    // Predicated region
    $region18: #{tpu_custom_call.1} parent=1 // pred_check
      _
    $region19: #{tpu_custom_call.1} parent=1 // pred_check_branch
      %31 = sbr.rel (0) target = $region21
    $region20: #{tpu_custom_call.1} parent=1 // pred_region
      _
    $region21: #{tpu_custom_call.1} parent=1 // pred_fallthru
      _
    // Predicated region
    $region22: #{tpu_custom_call.1} parent=1 // pred_check
      _
    $region23: #{tpu_custom_call.1} parent=1 // pred_check_branch
      %33 = sbr.rel (0) target = $region25
    $region24: #{tpu_custom_call.1} parent=1 // pred_region
      %34 = dma.done [#allocation3], 2048
    $region25: #{tpu_custom_call.1} parent=1 // pred_fallthru
      _
    %v35 = vld [vmem:[#allocation2] sm:$0xff]
    %v36 = vld [vmem:[#allocation2 + $0x8] sm:$0xff]
    %v37 = vld [vmem:[#allocation2 + $0x10] sm:$0xff]
    %v38 = vld [vmem:[#allocation2 + $0x18] sm:$0xff]
    %v39 = vld [vmem:[#allocation2 + $0x20] sm:$0xff]
    %v40 = vld [vmem:[#allocation2 + $0x28] sm:$0xff]
    %v41 = vld [vmem:[#allocation2 + $0x30] sm:$0xff]
    %v42 = vld [vmem:[#allocation2 + $0x38] sm:$0xff]
    %v43 = vld [vmem:[#allocation2 + $0x40] sm:$0xff]
    %v44 = vld [vmem:[#allocation2 + $0x48] sm:$0xff]
    %v45 = vld [vmem:[#allocation2 + $0x50] sm:$0xff]
    %v46 = vld [vmem:[#allocation2 + $0x58] sm:$0xff]
    %v47 = vld [vmem:[#allocation2 + $0x60] sm:$0xff]
    %v48 = vld [vmem:[#allocation2 + $0x68] sm:$0xff]
    %v49 = vld [vmem:[#allocation2 + $0x70] sm:$0xff]
    %v50 = vld [vmem:[#allocation2 + $0x78] sm:$0xff]
    %v51 = vadd.f32 %v35, %v36
    %52 = vadd.xlane.f32.xlu0 %v51
    %v53 = vpop.xlane.xlu0 %52
    %v54 = vadd.f32 %v37, %v38
    %55 = vadd.xlane.f32.xlu0 %v54
    %v56 = vpop.xlane.xlu0 %55
    %v57 = vadd.f32 %v39, %v40
    %58 = vadd.xlane.f32.xlu0 %v57
    %v59 = vpop.xlane.xlu0 %58
    %v60 = vadd.f32 %v41, %v42
    %61 = vadd.xlane.f32.xlu0 %v60
    %v62 = vpop.xlane.xlu0 %61
    %v63 = vadd.f32 %v43, %v44
    %64 = vadd.xlane.f32.xlu0 %v63
    %v65 = vpop.xlane.xlu0 %64
    %v66 = vadd.f32 %v45, %v46
    %67 = vadd.xlane.f32.xlu0 %v66
    %v68 = vpop.xlane.xlu0 %67
    %v69 = vadd.f32 %v47, %v48
    %70 = vadd.xlane.f32.xlu0 %v69
    %v71 = vpop.xlane.xlu0 %70
    %v72 = vadd.f32 %v49, %v50
    %73 = vadd.xlane.f32.xlu0 %v72
    %v74 = vpop.xlane.xlu0 %73
    %v75 = vmul.f32 %v53, 0.00390625
    %v76 = vmul.f32 %v56, 0.00390625
    %v77 = vmul.f32 %v59, 0.00390625
    %v78 = vmul.f32 %v62, 0.00390625
    %v79 = vmul.f32 %v65, 0.00390625
    %v80 = vmul.f32 %v68, 0.00390625
    %v81 = vmul.f32 %v71, 0.00390625
    %v82 = vmul.f32 %v74, 0.00390625
    %v83 = vld [vmem:[%s1] sm:$0xff]
    %v84 = vld [vmem:[%s1 + $0x8] sm:$0xff]
    %v85 = vld [vmem:[%s1 + $0x10] sm:$0xff]
    %v86 = vld [vmem:[%s1 + $0x18] sm:$0xff]
    %v87 = vmul.f32 %v75, %v83
    %v88 = vmul.f32 %v76, %v84
    %v89 = vmul.f32 %v77, %v85
    %v90 = vmul.f32 %v78, %v86
    %v91 = vmul.f32 %v79, %v83
    %v92 = vmul.f32 %v80, %v84
    %v93 = vmul.f32 %v81, %v85
    %v94 = vmul.f32 %v82, %v86
    %vm95 = vcmask 15360
    %v96 = vsel %vm95, %v87, 0.0
    %v97 = vsel %vm95, %v88, 0.0
    %v98 = vadd.f32 %v96, %v97
    %v99 = vsel %vm95, %v89, 0.0
    %v100 = vadd.f32 %v98, %v99
    %v101 = vsel %vm95, %v90, 0.0
    %v102 = vadd.f32 %v100, %v101
    %v103 = vrot.slane %v102, 4
    %v104 = vadd.f32 %v102, %v103
    %v105 = vrot.slane %v104, 2
    %v106 = vadd.f32 %v104, %v105
    %v107 = vrot.slane %v106, 1
    %v108 = vadd.f32 %v106, %v107
    %v109 = vsel %vm95, %v91, 0.0
    %v110 = vsel %vm95, %v92, 0.0
    %v111 = vadd.f32 %v109, %v110
    %v112 = vsel %vm95, %v93, 0.0
    %v113 = vadd.f32 %v111, %v112
    %v114 = vsel %vm95, %v94, 0.0
    %v115 = vadd.f32 %v113, %v114
    %v116 = vrot.slane %v115, 4
    %v117 = vadd.f32 %v115, %v116
    %v118 = vrot.slane %v117, 2
    %v119 = vadd.f32 %v117, %v118
    %v120 = vrot.slane %v119, 1
    %v121 = vadd.f32 %v119, %v120
    %v122 = vld [vmem:[%s2] sm:$0x1]
    %v123 = vadd.f32 %v108, %v122
    %v124 = vadd.f32 %v121, %v122
    %v125 = vmax.f32 %v123, 0.0
    %v126 = vmax.f32 %v124, 0.0
    %v127 = vld [vmem:[%s3] sm:$0xff]
    %v128 = vld [vmem:[%s3 + $0x8] sm:$0xff]
    %v129 = vld [vmem:[%s3 + $0x10] sm:$0xff]
    %v130 = vld [vmem:[%s3 + $0x18] sm:$0xff]
    %v131 = vlaneseq
    %v132 = vshrl.u32 %v131, 7
    %v133 = vsub.s32 0, %v132
    %v134 = vrot.slane %v125, %v133
    %v135 = vlaneseq
    %v136 = vshrl.u32 %v135, 7
    %v137 = vsub.s32 0, %v136
    %v138 = vrot.slane %v126, %v137
    %v139 = vmul.f32 %v134, %v127
    %v140 = vmul.f32 %v134, %v128
    %v141 = vmul.f32 %v134, %v129
    %v142 = vmul.f32 %v134, %v130
    %v143 = vmul.f32 %v138, %v127
    %v144 = vmul.f32 %v138, %v128
    %v145 = vmul.f32 %v138, %v129
    %v146 = vmul.f32 %v138, %v130
    %v147 = vsel %vm95, %v139, 0.0
    %148 = vadd.xlane.f32.xlu0 %v147
    %v149 = vpop.xlane.xlu0 %148
    %v150 = vsel %vm95, %v140, 0.0
    %151 = vadd.xlane.f32.xlu0 %v150
    %v152 = vpop.xlane.xlu0 %151
    %v153 = vsel %vm95, %v141, 0.0
    %154 = vadd.xlane.f32.xlu0 %v153
    %v155 = vpop.xlane.xlu0 %154
    %v156 = vsel %vm95, %v142, 0.0
    %157 = vadd.xlane.f32.xlu0 %v156
    %v158 = vpop.xlane.xlu0 %157
    %v159 = vsel %vm95, %v143, 0.0
    %160 = vadd.xlane.f32.xlu0 %v159
    %v161 = vpop.xlane.xlu0 %160
    %v162 = vsel %vm95, %v144, 0.0
    %163 = vadd.xlane.f32.xlu0 %v162
    %v164 = vpop.xlane.xlu0 %163
    %v165 = vsel %vm95, %v145, 0.0
    %166 = vadd.xlane.f32.xlu0 %v165
    %v167 = vpop.xlane.xlu0 %166
    %v168 = vsel %vm95, %v146, 0.0
    %169 = vadd.xlane.f32.xlu0 %v168
    %v170 = vpop.xlane.xlu0 %169
    %v171 = vld [vmem:[%s4] sm:$0xff]
    %v172 = vld [vmem:[%s4 + $0x8] sm:$0xff]
    %v173 = vld [vmem:[%s4 + $0x10] sm:$0xff]
    %v174 = vld [vmem:[%s4 + $0x18] sm:$0xff]
    %v175 = vadd.f32 %v149, %v171
    %v176 = vadd.f32 %v152, %v172
    %v177 = vadd.f32 %v155, %v173
    %v178 = vadd.f32 %v158, %v174
    %v179 = vadd.f32 %v161, %v171
    %v180 = vadd.f32 %v164, %v172
    %v181 = vadd.f32 %v167, %v173
    %v182 = vadd.f32 %v170, %v174
    %v183 = vxor.u32 %v175, 2147483648
    %v184 = vxor.u32 %v176, 2147483648
    %v185 = vxor.u32 %v177, 2147483648
    %v186 = vxor.u32 %v178, 2147483648
    %v187 = vxor.u32 %v179, 2147483648
    %v188 = vxor.u32 %v180, 2147483648
    %v189 = vxor.u32 %v181, 2147483648
    %v190 = vxor.u32 %v182, 2147483648
    %v191 = vmul.f32 %v183, 1.442695
    %v192 = vpow.pop %v191
    %v193 = vmul.f32 %v184, 1.442695
    %v194 = vpow.pop %v193
    %v195 = vmul.f32 %v185, 1.442695
    %v196 = vpow.pop %v195
    %v197 = vmul.f32 %v186, 1.442695
    %v198 = vpow.pop %v197
    %v199 = vmul.f32 %v187, 1.442695
    %v200 = vpow.pop %v199
    %v201 = vmul.f32 %v188, 1.442695
    %v202 = vpow.pop %v201
    %v203 = vmul.f32 %v189, 1.442695
    %v204 = vpow.pop %v203
    %v205 = vmul.f32 %v190, 1.442695
    %v206 = vpow.pop %v205
    %v207 = vadd.f32 %v192, 1.0
    %v208 = vadd.f32 %v194, 1.0
    %v209 = vadd.f32 %v196, 1.0
    %v210 = vadd.f32 %v198, 1.0
    %v211 = vadd.f32 %v200, 1.0
    %v212 = vadd.f32 %v202, 1.0
    %v213 = vadd.f32 %v204, 1.0
    %v214 = vadd.f32 %v206, 1.0
    %v215 = vrcp.pop %v207
    %v216 = vmul.f32 1.0, %v215
    %v217 = vrcp.pop %v208
    %v218 = vmul.f32 1.0, %v217
    %v219 = vrcp.pop %v209
    %v220 = vmul.f32 1.0, %v219
    %v221 = vrcp.pop %v210
    %v222 = vmul.f32 1.0, %v221
    %v223 = vrcp.pop %v211
    %v224 = vmul.f32 1.0, %v223
    %v225 = vrcp.pop %v212
    %v226 = vmul.f32 1.0, %v225
    %v227 = vrcp.pop %v213
    %v228 = vmul.f32 1.0, %v227
    %v229 = vrcp.pop %v214
    %v230 = vmul.f32 1.0, %v229
    %232 = vset.pattern.permute.xlu0 0
    %233 = vperm.xlu0 %232, %v216
    %v234 = vpop.permute.xlu0 %233
    %237 = vset.pattern.permute.xlu0 0
    %238 = vperm.xlu0 %237, %v218
    %v239 = vpop.permute.xlu0 %238
    %242 = vset.pattern.permute.xlu0 0
    %243 = vperm.xlu0 %242, %v220
    %v244 = vpop.permute.xlu0 %243
    %247 = vset.pattern.permute.xlu0 0
    %248 = vperm.xlu0 %247, %v222
    %v249 = vpop.permute.xlu0 %248
    %252 = vset.pattern.permute.xlu0 0
    %253 = vperm.xlu0 %252, %v224
    %v254 = vpop.permute.xlu0 %253
    %257 = vset.pattern.permute.xlu0 0
    %258 = vperm.xlu0 %257, %v226
    %v259 = vpop.permute.xlu0 %258
    %262 = vset.pattern.permute.xlu0 0
    %263 = vperm.xlu0 %262, %v228
    %v264 = vpop.permute.xlu0 %263
    %267 = vset.pattern.permute.xlu0 0
    %268 = vperm.xlu0 %267, %v230
    %v269 = vpop.permute.xlu0 %268
    %v271 = vmul.f32 %v35, %v234
    %v272 = vmul.f32 %v36, %v234
    %v273 = vmul.f32 %v37, %v239
    %v274 = vmul.f32 %v38, %v239
    %v275 = vmul.f32 %v39, %v244
    %v276 = vmul.f32 %v40, %v244
    %v277 = vmul.f32 %v41, %v249
    %v278 = vmul.f32 %v42, %v249
    %v279 = vmul.f32 %v43, %v254
    %v280 = vmul.f32 %v44, %v254
    %v281 = vmul.f32 %v45, %v259
    %v282 = vmul.f32 %v46, %v259
    %v283 = vmul.f32 %v47, %v264
    %v284 = vmul.f32 %v48, %v264
    %v285 = vmul.f32 %v49, %v269
    %v286 = vmul.f32 %v50, %v269
    %287 = vst [vmem:[#allocation5] sm:$0xff] %v271
    %288 = vst [vmem:[#allocation5 + $0x8] sm:$0xff] %v272
    %289 = vst [vmem:[#allocation5 + $0x10] sm:$0xff] %v273
    %290 = vst [vmem:[#allocation5 + $0x18] sm:$0xff] %v274
    %291 = vst [vmem:[#allocation5 + $0x20] sm:$0xff] %v275
    %292 = vst [vmem:[#allocation5 + $0x28] sm:$0xff] %v276
    %293 = vst [vmem:[#allocation5 + $0x30] sm:$0xff] %v277
    %294 = vst [vmem:[#allocation5 + $0x38] sm:$0xff] %v278
    %295 = vst [vmem:[#allocation5 + $0x40] sm:$0xff] %v279
    %296 = vst [vmem:[#allocation5 + $0x48] sm:$0xff] %v280
    %297 = vst [vmem:[#allocation5 + $0x50] sm:$0xff] %v281
    %298 = vst [vmem:[#allocation5 + $0x58] sm:$0xff] %v282
    %299 = vst [vmem:[#allocation5 + $0x60] sm:$0xff] %v283
    %300 = vst [vmem:[#allocation5 + $0x68] sm:$0xff] %v284
    %301 = vst [vmem:[#allocation5 + $0x70] sm:$0xff] %v285
    %302 = vst [vmem:[#allocation5 + $0x78] sm:$0xff] %v286
    // Predicated region
    $region26: #{tpu_custom_call.1} parent=1 // pred_check
      _
    $region27: #{tpu_custom_call.1} parent=1 // pred_check_branch
      %304 = sbr.rel (0) target = $region29
    $region28: #{tpu_custom_call.1} parent=1 // pred_region
      %s306 = ssub.s32 2048, 2048
      %307 = vsyncadd [#allocation4], %s306
      %s308 = sshll.u32 [#allocation5], 4
      %s309 = int_to_ptr.vmem [resolvable:$true] %s308
      %314 = dma.vmem_to_hbm [thread:$0]  %s309, 2048, %s5, [#allocation4], 256, 256, 16
    $region29: #{tpu_custom_call.1} parent=1 // pred_fallthru
      _
    // Predicated region
    $region30: #{tpu_custom_call.1} parent=1 // pred_check
      _
    $region31: #{tpu_custom_call.1} parent=1 // pred_check_branch
      %316 = sbr.rel (0) target = $region33
    $region32: #{tpu_custom_call.1} parent=1 // pred_region
      %317 = dma.done [#allocation4], 2048
    $region33: #{tpu_custom_call.1} parent=1 // pred_fallthru
      _
    %318 = vsyncpa [#allocation3], 1
    %319 = vsyncpa [#allocation4], 1

</llo_original>
